<compile_context>
chip_gen: v6e
topology: v6e:2x2x1
jax: 0.10.0
libtpu: 0.0.40
codegen_flags: <defaults>
</compile_context>

<pallas_src>
import functools

import jax
import jax.numpy as jnp
from jax.experimental import pallas as pl
from jax.experimental.pallas import tpu as pltpu


# ----------------------------------------------------------------------------- kernels


def _fused_kernel(x_ref, w_ref, b_ref, o_ref):
    # Whole (padded) vocab fits in one lane-dense tile: fuse matmul + log_softmax.
    logits = jnp.dot(x_ref[...], w_ref[...], preferred_element_type=jnp.float32)
    logits = logits + b_ref[...].astype(jnp.float32)
    m = jnp.max(logits, axis=-1, keepdims=True)
    lse = m + jnp.log(jnp.sum(jnp.exp(logits - m), axis=-1, keepdims=True))
    o_ref[...] = (logits - lse).astype(o_ref.dtype)


def _logits_lse_kernel(x_ref, w_ref, b_ref, logits_ref, lse_ref, m_ref, l_ref):
    # grid = (num_v, num_m): vocab OUTER (weight streamed once), rows INNER.
    # x_ref      : (tm, D)        VMEM
    # w_ref      : (D, tv)        VMEM (changes only when the vocab tile changes)
    # b_ref      : (1, tv)        VMEM
    # logits_ref : (tm, tv)  out  (raw biased logits, f32)
    # lse_ref    : (tm, 1)   out  (running log-sum-exp; final at last vocab tile)
    # m_ref,l_ref: (num_m, tm, 1) f32 scratch (running max / sum-exp per row tile)
    j = pl.program_id(0)  # vocab tile (outer)
    i = pl.program_id(1)  # row tile (inner)

    logits = jnp.dot(x_ref[...], w_ref[...], preferred_element_type=jnp.float32)
    logits = logits + b_ref[...].astype(jnp.float32)
    logits_ref[...] = logits.astype(logits_ref.dtype)

    @pl.when(j == 0)
    def _init():
        shape = (m_ref.shape[1], m_ref.shape[2])
        m_ref[i] = jnp.full(shape, -jnp.inf, dtype=jnp.float32)
        l_ref[i] = jnp.zeros(shape, dtype=jnp.float32)

    m_prev = m_ref[i]
    l_prev = l_ref[i]
    m_new = jnp.maximum(m_prev, jnp.max(logits, axis=-1, keepdims=True))
    # exp on the EUP, max/sum on the XLU -> hidden under the matmul.
    l_new = l_prev * jnp.exp(m_prev - m_new) + jnp.sum(
        jnp.exp(logits - m_new), axis=-1, keepdims=True)
    m_ref[i] = m_new
    l_ref[i] = l_new
    # Running LSE written every visit (keeps the output block initialized for
    # every writeback); the final visit (last vocab tile) holds the true LSE.
    lse_ref[...] = m_new + jnp.log(l_new)


def _finalize_kernel(logits_ref, lse_ref, o_ref):
    # out = logits - lse, elementwise; logits buffer is aliased to the output.
    o_ref[...] = (logits_ref[...].astype(jnp.float32) - lse_ref[...]).astype(o_ref.dtype)


# ----------------------------------------------------------------------------- wrapper


def _round_up(a, m):
    return (a + m - 1) // m * m


def _hw_info():
    """(physical VMEM bytes per core, is_v5e). Conservative fallbacks off-TPU."""
    vmem_cap = 64 * 1024 * 1024  # conservative (v7x) fallback
    try:
        vmem_cap = int(pltpu.get_tpu_info().vmem_capacity_bytes)
    except Exception:
        pass
    kind = ""
    try:
        kind = jax.devices()[0].device_kind.lower()
    except Exception:
        pass
    is_v5e = ("v5e" in kind) or ("v5 lite" in kind) or ("v5litepod" in kind)
    return vmem_cap, is_v5e


def _vmem_limit(tile_bytes, vmem_cap):
    lim = max(int(1.5 * tile_bytes), 32 * 1024 * 1024)
    return int(min(lim, int(0.85 * vmem_cap)))


@functools.partial(jax.jit, static_argnames=("tm", "max_tv", "out_dtype"))
def projection_layer(x, w, b, *, tm=None, max_tv=2048, out_dtype=jnp.float32):
    """x: (B, S, D), w: (D, V), b: (V,) -> (B, S, V) log-probabilities."""
    B, S, D = x.shape
    Dw, V = w.shape
    assert D == Dw and b.shape == (V,)
    M = B * S

    vmem_cap, is_v5e = _hw_info()
    budget = int(0.6 * vmem_cap)

    x_bytes = jnp.dtype(x.dtype).itemsize
    w_bytes = jnp.dtype(w.dtype).itemsize
    out_bytes = jnp.dtype(out_dtype).itemsize

    # Row tile: 128 on v5e (4x128 MXU), 256 on v6e/v7x; rounded to the dtype's
    # native sublane multiple, clamped so tiny inputs do not pay huge padding.
    if tm is None:
        tm = 128 if is_v5e else 256
    sub = {4: 8, 2: 16, 1: 32}.get(x_bytes, 8)
    tm_eff = max(sub, min(tm, _round_up(M, sub)))
    Mp = _round_up(M, tm_eff)
    num_m = Mp // tm_eff

    # Vocab tile from the VMEM budget: double-buffered weight + logits output
    # tile + in-kernel f32 temporaries (dot result, exp) + bias, with the x
    # buffers and LSE scratch as a fixed cost.
    fixed = 2 * tm_eff * D * x_bytes + 2 * Mp * 4
    per_tv = 2 * D * w_bytes + 2 * tm_eff * 4 + 2 * tm_eff * 4 + 2 * 4
    V128 = _round_up(V, 128)
    tv = (budget - fixed) // per_tv
    tv = max(128, min((int(tv) // 128) * 128, int(max_tv), V128))

    x2 = x.reshape(M, D)
    if Mp != M:
        x2 = jnp.pad(x2, ((0, Mp - M), (0, 0)))

    if V128 <= tv:
        # ------------------------------------------------ fused single-tile path
        Vp = V128
        wp = w if Vp == V else jnp.pad(w, ((0, 0), (0, Vp - V)))
        bp = b if Vp == V else jnp.pad(b, (0, Vp - V), constant_values=-1e30)
        b2 = bp.reshape(1, Vp)

        tile_bytes = (2 * tm_eff * D * x_bytes + 2 * D * Vp * w_bytes + 2 * Vp * 4
                      + 2 * tm_eff * Vp * out_bytes + 2 * tm_eff * Vp * 4)
        cost = pl.CostEstimate(
            flops=2 * Mp * D * Vp + 4 * Mp * Vp,
            transcendentals=Mp * Vp + Mp,
            bytes_accessed=int(Mp * D * x_bytes + D * Vp * w_bytes + Vp * 4
                               + Mp * Vp * out_bytes),
        )
        out = pl.pallas_call(
            _fused_kernel,
            out_shape=jax.ShapeDtypeStruct((Mp, Vp), out_dtype),
            grid_spec=pltpu.PrefetchScalarGridSpec(
                num_scalar_prefetch=0,
                grid=(num_m,),
                in_specs=[
                    pl.BlockSpec((tm_eff, D), lambda i: (i, 0)),
                    pl.BlockSpec((D, Vp), lambda i: (0, 0)),
                    pl.BlockSpec((1, Vp), lambda i: (0, 0)),
                ],
                out_specs=pl.BlockSpec((tm_eff, Vp), lambda i: (i, 0)),
            ),
            compiler_params=pltpu.CompilerParams(
                dimension_semantics=("parallel",),
                vmem_limit_bytes=_vmem_limit(tile_bytes, vmem_cap)),
            cost_estimate=cost,
        )(x2, wp, b2)
    else:
        # --------------------------------------------- streamed two-call path
        Vp = _round_up(V, tv)
        num_v = Vp // tv
        wp = w if Vp == V else jnp.pad(w, ((0, 0), (0, Vp - V)))
        bp = b if Vp == V else jnp.pad(b, (0, Vp - V), constant_values=-1e30)
        b2 = bp.reshape(1, Vp)

        # ---- call 1: logits (f32) + online LSE, weight streamed once total.
        tile_bytes1 = (2 * tm_eff * D * x_bytes + 2 * D * tv * w_bytes + 2 * tv * 4
                       + 2 * tm_eff * tv * 4      # logits output tile (f32)
                       + 2 * tm_eff * tv * 4      # f32 temporaries (dot, exp)
                       + 2 * Mp * 4               # m/l scratch
                       + 2 * tm_eff * 4)          # lse tile
        cost1 = pl.CostEstimate(
            flops=2 * Mp * D * Vp + 5 * Mp * Vp,
            transcendentals=Mp * Vp + Mp * num_v,
            bytes_accessed=int(num_v * Mp * D * x_bytes + D * Vp * w_bytes + Vp * 4
                               + Mp * Vp * 4 + num_v * Mp * 4),
        )
        logits, lse = pl.pallas_call(
            _logits_lse_kernel,
            out_shape=(jax.ShapeDtypeStruct((Mp, Vp), jnp.float32),
                       jax.ShapeDtypeStruct((Mp, 1), jnp.float32)),
            grid_spec=pltpu.PrefetchScalarGridSpec(
                num_scalar_prefetch=0,
                grid=(num_v, num_m),   # vocab OUTER -> weight tile reused across rows
                in_specs=[
                    pl.BlockSpec((tm_eff, D), lambda j, i: (i, 0)),
                    pl.BlockSpec((D, tv), lambda j, i: (0, j)),
                    pl.BlockSpec((1, tv), lambda j, i: (0, j)),
                ],
                out_specs=[
                    pl.BlockSpec((tm_eff, tv), lambda j, i: (i, j)),
                    pl.BlockSpec((tm_eff, 1), lambda j, i: (i, 0)),
                ],
                scratch_shapes=[
                    pltpu.VMEM((num_m, tm_eff, 1), jnp.float32),  # running max
                    pltpu.VMEM((num_m, tm_eff, 1), jnp.float32),  # running sum(exp)
                ],
            ),
            compiler_params=pltpu.CompilerParams(
                dimension_semantics=("arbitrary", "arbitrary"),
                vmem_limit_bytes=_vmem_limit(tile_bytes1, vmem_cap)),
            cost_estimate=cost1,
        )(x2, wp, b2)

        # ---- call 2: out = logits - lse, in place (logits buffer aliased).
        alias = {0: 0} if jnp.dtype(out_dtype) == jnp.dtype(jnp.float32) else {}
        tile_bytes2 = (2 * tm_eff * tv * 4 + 2 * tm_eff * 4
                       + 2 * tm_eff * tv * out_bytes)
        cost2 = pl.CostEstimate(
            flops=Mp * Vp,
            transcendentals=0,
            bytes_accessed=int(Mp * Vp * 4 + Mp * 4 + Mp * Vp * out_bytes),
        )
        out = pl.pallas_call(
            _finalize_kernel,
            out_shape=jax.ShapeDtypeStruct((Mp, Vp), out_dtype),
            grid_spec=pltpu.PrefetchScalarGridSpec(
                num_scalar_prefetch=0,
                grid=(num_m, num_v),
                in_specs=[
                    pl.BlockSpec((tm_eff, tv), lambda i, j: (i, j)),
                    pl.BlockSpec((tm_eff, 1), lambda i, j: (i, 0)),
                ],
                out_specs=pl.BlockSpec((tm_eff, tv), lambda i, j: (i, j)),
            ),
            compiler_params=pltpu.CompilerParams(
                dimension_semantics=("parallel", "arbitrary"),
                vmem_limit_bytes=_vmem_limit(tile_bytes2, vmem_cap)),
            cost_estimate=cost2,
            input_output_aliases=alias,
        )(logits, lse)

    if Mp != M or Vp != V:
        out = out[:M, :V]
    return out.reshape(B, S, V)


def _reference(x, w, b):
    logits = jnp.einsum("bsd,dv->bsv", x, w) + b
    return jax.nn.log_softmax(logits, axis=-1)


if __name__ == "__main__":
    key = jax.random.PRNGKey(0)

    # --- Test 1: small shapes from the module; vocab fits one tile (fused path).
    batch, seq, d_model, vocab_size = 2, 8, 32, 128
    kx, kw, kb, key = jax.random.split(key, 4)
    bound = 1.0 / (d_model ** 0.5)
    w = jax.random.uniform(kw, (d_model, vocab_size), jnp.float32, -bound, bound)
    b = jax.random.uniform(kb, (vocab_size,), jnp.float32, -bound, bound)
    x = jax.random.normal(kx, (batch, seq, d_model), jnp.float32)

    out = jax.block_until_ready(projection_layer(x, w, b))
    ref = _reference(x, w, b)
    assert out.shape == (batch, seq, vocab_size)
    assert jnp.allclose(out, ref, atol=1e-5, rtol=1e-5), float(jnp.max(jnp.abs(out - ref)))

    # --- Test 2: ragged M and V, multi-tile vocab (streamed path: online LSE,
    #             logits writeback + aliased finalize, padding on both axes).
    batch2, seq2, d_model2, vocab2 = 2, 5, 32, 200
    kx2, kw2, kb2, key = jax.random.split(key, 4)
    bound2 = 1.0 / (d_model2 ** 0.5)
    w2 = jax.random.uniform(kw2, (d_model2, vocab2), jnp.float32, -bound2, bound2)
    b2 = jax.random.uniform(kb2, (vocab2,), jnp.float32, -bound2, bound2)
    x2 = jax.random.normal(kx2, (batch2, seq2, d_model2), jnp.float32)

    out2 = jax.block_until_ready(projection_layer(x2, w2, b2, max_tv=128))
    ref2 = _reference(x2, w2, b2)
    assert out2.shape == (batch2, seq2, vocab2)
    assert jnp.allclose(out2, ref2, atol=1e-5, rtol=1e-5), float(jnp.max(jnp.abs(out2 - ref2)))

    print("KERNEL_OK")
</pallas_src>

<mosaic_0001>
module attributes {stable_mosaic.version = 11 : i64} {
  func.func @_fused_kernel(%arg0: i32, %arg1: memref<16x32xf32, #tpu.memory_space<vmem>>, %arg2: memref<32x128xf32, #tpu.memory_space<vmem>>, %arg3: memref<1x128xf32, #tpu.memory_space<vmem>>, %arg4: memref<16x128xf32, #tpu.memory_space<vmem>>) attributes {dimension_semantics = [#tpu.dimension_semantics<parallel>], iteration_bounds = array<i64: 1>, scalar_prefetch = 0 : i64, scratch_operands = 0 : i64, tpu.core_type = #tpu.core_type<tc>, window_params = [{transform_indices = @transform_0, window_bounds = array<i64: 16, 32>}, {pipeline_mode = #tpu.pipeline_mode<synchronous>, transform_indices = @transform_1, window_bounds = array<i64: 32, 128>}, {pipeline_mode = #tpu.pipeline_mode<synchronous>, transform_indices = @transform_2, window_bounds = array<i64: 1, 128>}, {transform_indices = @transform_3, window_bounds = array<i64: 16, 128>}]} {
    %c0 = arith.constant 0 : index
    %c0_0 = arith.constant 0 : index
    %0 = vector.load %arg1[%c0, %c0_0] : memref<16x32xf32, #tpu.memory_space<vmem>>, vector<16x32xf32>
    %c0_1 = arith.constant 0 : index
    %c0_2 = arith.constant 0 : index
    %1 = vector.load %arg2[%c0_1, %c0_2] : memref<32x128xf32, #tpu.memory_space<vmem>>, vector<32x128xf32>
    %cst = arith.constant dense<0.000000e+00> : vector<16x128xf32>
    %2 = tpu.matmul %0, %1, %cst {dimension_numbers = #tpu.dot_dimension_numbers<[1], [0], [0], [1], [0, 0, 1, 1], [], []>} : vector<16x32xf32>, vector<32x128xf32>, vector<16x128xf32> -> vector<16x128xf32>
    %c0_3 = arith.constant 0 : index
    %c0_4 = arith.constant 0 : index
    %3 = vector.load %arg3[%c0_3, %c0_4] : memref<1x128xf32, #tpu.memory_space<vmem>>, vector<1x128xf32>
    %4 = vector.broadcast %3 : vector<1x128xf32> to vector<16x128xf32>
    %5 = arith.addf %2, %4 : vector<16x128xf32>
    %cst_5 = arith.constant dense<0xFF800000> : vector<16xf32>
    %6 = vector.multi_reduction <maximumf>, %5, %cst_5 [1] : vector<16x128xf32> to vector<16xf32>
    %7 = vector.shape_cast %6 : vector<16xf32> to vector<16x1xf32>
    %8 = vector.broadcast %7 : vector<16x1xf32> to vector<16x128xf32>
    %9 = arith.subf %5, %8 : vector<16x128xf32>
    %10 = math.exp %9 : vector<16x128xf32>
    %cst_6 = arith.constant dense<0.000000e+00> : vector<16xf32>
    %11 = vector.multi_reduction <add>, %10, %cst_6 [1] : vector<16x128xf32> to vector<16xf32>
    %12 = vector.shape_cast %11 : vector<16xf32> to vector<16x1xf32>
    %13 = math.log %12 : vector<16x1xf32>
    %14 = arith.addf %7, %13 : vector<16x1xf32>
    %15 = vector.broadcast %14 : vector<16x1xf32> to vector<16x128xf32>
    %16 = arith.subf %5, %15 : vector<16x128xf32>
    %c0_7 = arith.constant 0 : index
    %c0_8 = arith.constant 0 : index
    %17 = vector.load %arg4[%c0_7, %c0_8] : memref<16x128xf32, #tpu.memory_space<vmem>>, vector<16x128xf32>
    tpu.vector_store %arg4[%c0_7, %c0_8], %16 {strides = array<i32>} : memref<16x128xf32, #tpu.memory_space<vmem>>, vector<16x128xf32>,
    return
  }
  func.func @transform_0(%arg0: i32) -> (i32, i32) {
    %c0_i32 = arith.constant 0 : i32
    %c0_i32_0 = arith.constant 0 : i32
    return %arg0, %c0_i32 : i32, i32
  }
  func.func @transform_1(%arg0: i32) -> (i32, i32) {
    %c0_i32 = arith.constant 0 : i32
    %c0_i32_0 = arith.constant 0 : i32
    %c0_i32_1 = arith.constant 0 : i32
    return %c0_i32, %c0_i32_0 : i32, i32
  }
  func.func @transform_2(%arg0: i32) -> (i32, i32) {
    %c0_i32 = arith.constant 0 : i32
    %c0_i32_0 = arith.constant 0 : i32
    %c0_i32_1 = arith.constant 0 : i32
    return %c0_i32, %c0_i32_0 : i32, i32
  }
  func.func @transform_3(%arg0: i32) -> (i32, i32) {
    %c0_i32 = arith.constant 0 : i32
    %c0_i32_0 = arith.constant 0 : i32
    return %arg0, %c0_i32 : i32, i32
  }
}

</mosaic_0001>

<llo_original>
// kernel: projection_layer.1
$region0: #{projection_layer.1}
  #allocation0 [shape = 'u32[]', space=smem, size = 0x4, offset = 0x4, fixed_abs, tag = 'smem constant byte address 0x4 - core index']
  #allocation1 [shape = 'u32[144,128]{1,0:T(1,128)}', space=vmem, size = 0x12000, scoped, tag = 'internal scratch']
  %s0 = inlined_call_operand.hbm [shape: f32[16,32], index: 0, kind: input, shape index: {}]
  %s1 = inlined_call_operand.hbm [shape: f32[32,128], index: 1, kind: input, shape index: {}]
  %s2 = inlined_call_operand.vmem [shape: f32[1,128], index: 2, kind: input, shape index: {}]
  %s3 = inlined_call_operand.hbm [shape: f32[16,128], index: 3, kind: output, shape index: {}]
  %s4 = sld [smem:[#allocation0]]
  $region30: #{projection_layer.1} parent=0
    _
  %s6 = ssub.s32 1, %s4
  %s7 = scalar_select 0, %s6, %s4
  $region1: #{projection_layer.1} parent=0
    #allocation2 [shape = 'u8[8192]{0}', space=vmem, size = 0x2000, scoped, tag = 'input window, operand 0, single buffered']
    #allocation3 [shape = 's32[1]{0}', space=sflag, size = 0x4, scoped, tag = 'scoped memory for projection_layer.1']
    #allocation4 [shape = 's32[1]{0}', space=sflag, size = 0x4, scoped, tag = 'scoped memory for projection_layer.1']
    #allocation5 [shape = 'u8[16384]{0}', space=vmem, size = 0x4000, scoped, tag = 'input window, operand 1, single buffered']
    #allocation6 [shape = 's32[1]{0}', space=sflag, size = 0x4, scoped, tag = 'scoped memory for projection_layer.1']
    #allocation7 [shape = 'u8[8192]{0}', space=vmem, size = 0x2000, scoped, tag = 'output window, operand 0, single buffered']
    %8 = vsyncpa [#allocation3], 0
    %9 = vsyncpa [#allocation6], 0
    %10 = vsyncpa [#allocation4], 0
    // Predicated region
    $region2: #{projection_layer.1} parent=1 // pred_check
      _
    $region3: #{projection_layer.1} parent=1 // pred_check_branch
      %12 = sbr.rel (0) target = $region5
    $region4: #{projection_layer.1} parent=1 // pred_region
      %s14 = ssub.s32 256, 256
      %15 = vsyncadd [#allocation3], %s14
      %s16 = sshll.u32 [#allocation2], 4
      %s17 = int_to_ptr.vmem [resolvable:$true] %s16
      %22 = dma.hbm_to_vmem [thread:$0]  %s0, 256, %s17, [#allocation3], 128, 128, 8
    $region5: #{projection_layer.1} parent=1 // pred_fallthru
      _
    // Predicated region
    $region6: #{projection_layer.1} parent=1 // pred_check
      _
    $region7: #{projection_layer.1} parent=1 // pred_check_branch
      %24 = sbr.rel (0) target = $region9
    $region8: #{projection_layer.1} parent=1 // pred_region
      %s26 = ssub.s32 512, 512
      %27 = vsyncadd [#allocation6], %s26
      %s28 = sshll.u32 [#allocation5], 4
      %s29 = int_to_ptr.vmem [resolvable:$true] %s28
      %34 = dma.hbm_to_vmem [thread:$0]  %s1, 512, %s29, [#allocation6], 128, 128, 8
    $region9: #{projection_layer.1} parent=1 // pred_fallthru
      _
    // Predicated region
    $region10: #{projection_layer.1} parent=1 // pred_check
      _
    $region11: #{projection_layer.1} parent=1 // pred_check_branch
      %36 = sbr.rel (0) target = $region13
    $region12: #{projection_layer.1} parent=1 // pred_region
      _
    $region13: #{projection_layer.1} parent=1 // pred_fallthru
      _
    // Predicated region
    $region14: #{projection_layer.1} parent=1 // pred_check
      _
    $region15: #{projection_layer.1} parent=1 // pred_check_branch
      %38 = sbr.rel (0) target = $region17
    $region16: #{projection_layer.1} parent=1 // pred_region
      %39 = dma.done [#allocation3], 256
    $region17: #{projection_layer.1} parent=1 // pred_fallthru
      _
    // Predicated region
    $region18: #{projection_layer.1} parent=1 // pred_check
      _
    $region19: #{projection_layer.1} parent=1 // pred_check_branch
      %41 = sbr.rel (0) target = $region21
    $region20: #{projection_layer.1} parent=1 // pred_region
      %42 = dma.done [#allocation6], 512
    $region21: #{projection_layer.1} parent=1 // pred_fallthru
      _
    %v43 = vld [vmem:[#allocation2] sm:$0xff]
    %v44 = vld [vmem:[#allocation2 + $0x8] sm:$0xff]
    %v45 = vld [vmem:[#allocation5] sm:$0xff]
    %v46 = vld [vmem:[#allocation5 + $0x8] sm:$0xff]
    %v47 = vld [vmem:[#allocation5 + $0x10] sm:$0xff]
    %v48 = vld [vmem:[#allocation5 + $0x18] sm:$0xff]
    %v49 = vld [vmem:[%s2] sm:$0x1]
    %v51 = vlaneseq
    %v52 = vshrl.u32 %v51, 7
    %v53 = vsub.s32 0, %v52
    %v54 = vrot.slane %v49, %v53
    %vm56 = vcmask 261120
    %v58 = vsel %vm56, %v43, 0
    %v61 = vsel %vm56, %v44, 0
    %63 = vmatprep.subr.mxu0 0.0
    %64 = vmatpush1.msra.mxu0 0.0
    %65 = vmatprep.subr.mxu0 0.0
    %66 = vmatpush1.msra.mxu0 0.0
    %67 = vmatprep.subr.mxu0 0.0
    %68 = vmatpush1.msra.mxu0 0.0
    %69 = vmatprep.subr.mxu0 0.0
    %70 = vmatpush1.msra.mxu0 0.0
    %71 = vmatprep.subr.mxu0 0.0
    %72 = vmatpush1.msra.mxu0 0.0
    %73 = vmatprep.subr.mxu0 0.0
    %74 = vmatpush1.msra.mxu0 0.0
    %75 = vmatprep.subr.mxu0 0.0
    %76 = vmatpush1.msra.mxu0 0.0
    %77 = vmatprep.subr.mxu0 0.0
    %78 = vmatpush1.msra.mxu0 0.0
    %79 = vmatprep.subr.mxu0 0.0
    %80 = vmatpush1.msra.mxu0 0.0
    %81 = vmatprep.subr.mxu0 0.0
    %82 = vmatpush1.msra.mxu0 0.0
    %83 = vmatprep.subr.mxu0 0.0
    %84 = vmatpush1.msra.mxu0 0.0
    %85 = vmatprep.subr.mxu0 0.0
    %86 = vmatpush1.msra.mxu0 0.0
    %87 = vmatprep.subr.mxu0 0.0
    %88 = vmatpush1.msra.mxu0 %v48
    %89 = vmatprep.subr.mxu0 0.0
    %90 = vmatpush1.msra.mxu0 %v47
    %91 = vmatprep.subr.mxu0 0.0
    %92 = vmatpush1.msra.mxu0 %v46
    %93 = vmatprep.subr.mxu0 0.0
    %94 = vmatpush1.msra.mxu0 %v45
    %95 = vmatprep.subr.mxu0 0.0
    %96 = vmatpush2.msra.mxu0 0.0
    %97 = vmatprep.subr.mxu0 0.0
    %98 = vmatpush2.msra.mxu0 0.0
    %99 = vmatprep.subr.mxu0 0.0
    %100 = vmatpush2.msra.mxu0 0.0
    %101 = vmatprep.subr.mxu0 0.0
    %102 = vmatpush2.msra.mxu0 0.0
    %103 = vmatprep.subr.mxu0 0.0
    %104 = vmatpush2.msra.mxu0 0.0
    %105 = vmatprep.subr.mxu0 0.0
    %106 = vmatpush2.msra.mxu0 0.0
    %107 = vmatprep.subr.mxu0 0.0
    %108 = vmatpush2.msra.mxu0 0.0
    %109 = vmatprep.subr.mxu0 0.0
    %110 = vmatpush2.msra.mxu0 0.0
    %111 = vmatprep.subr.mxu0 0.0
    %112 = vmatpush2.msra.mxu0 0.0
    %113 = vmatprep.subr.mxu0 0.0
    %114 = vmatpush2.msra.mxu0 0.0
    %115 = vmatprep.subr.mxu0 0.0
    %116 = vmatpush2.msra.mxu0 0.0
    %117 = vmatprep.subr.mxu0 0.0
    %118 = vmatpush2.msra.mxu0 0.0
    %119 = vmatprep.subr.mxu0 0.0
    %120 = vmatpush2.msra.mxu0 0.0
    %121 = vmatprep.subr.mxu0 0.0
    %122 = vmatpush2.msra.mxu0 0.0
    %123 = vmatprep.subr.mxu0 0.0
    %124 = vmatpush2.msra.mxu0 0.0
    %125 = vmatprep.subr.mxu0 0.0
    %126 = vmatpush2.msra.mxu0 0.0
    %127 = vmatprep.mubr.f32.mxu0 0.0
    %128 = vmatmul.mubr.f32.gmra.mxu0 %v58
    %v129 = vpop.f32.mrf.mxu0
    %v130 = vadd.f32 %v54, %v129
    %v131 = vpop.f32.mrf.mxu0
    %132 = vmatprep.mubr.f32.mxu0 0.0
    %133 = vmatmul.mubr.f32.gmra.mxu0 %v61
    %v134 = vpop.f32.mrf.mxu0
    %v135 = vadd.f32 %v54, %v134
    %v136 = vpop.f32.mrf.mxu0
    %137 = vdwg.mxu0
    %138 = vmax.xlane.f32.xlu0 %v130
    %v139 = vpop.xlane.xlu0 %138
    %140 = vmax.xlane.f32.xlu0 %v135
    %v141 = vpop.xlane.xlu0 %140
    %v142 = vsub.f32 %v130, %v139
    %v143 = vsub.f32 %v135, %v141
    %v144 = vmul.f32 %v142, 1.442695
    %v145 = vpow.pop %v144
    %v146 = vmul.f32 %v143, 1.442695
    %v147 = vpow.pop %v146
    %148 = vadd.xlane.f32.xlu0 %v145
    %v149 = vpop.xlane.xlu0 %148
    %150 = vadd.xlane.f32.xlu0 %v147
    %v151 = vpop.xlane.xlu0 %150
    %v152 = vlog2.pop %v149
    %v153 = vmul.f32 %v152, 0.6931472
    %v154 = vlog2.pop %v151
    %v155 = vmul.f32 %v154, 0.6931472
    %v156 = vadd.f32 %v139, %v153
    %v157 = vadd.f32 %v141, %v155
    %v158 = vsub.f32 %v130, %v156
    %v159 = vsub.f32 %v135, %v157
    %160 = vst [vmem:[#allocation7] sm:$0xff] %v158
    %161 = vst [vmem:[#allocation7 + $0x8] sm:$0xff] %v159
    // Predicated region
    $region22: #{projection_layer.1} parent=1 // pred_check
      _
    $region23: #{projection_layer.1} parent=1 // pred_check_branch
      %163 = sbr.rel (0) target = $region25
    $region24: #{projection_layer.1} parent=1 // pred_region
      %s165 = ssub.s32 256, 256
      %166 = vsyncadd [#allocation4], %s165
      %s167 = sshll.u32 [#allocation7], 4
      %s168 = int_to_ptr.vmem [resolvable:$true] %s167
      %173 = dma.vmem_to_hbm [thread:$0]  %s168, 256, %s3, [#allocation4], 128, 128, 8
    $region25: #{projection_layer.1} parent=1 // pred_fallthru
      _
    // Predicated region
    $region26: #{projection_layer.1} parent=1 // pred_check
      _
    $region27: #{projection_layer.1} parent=1 // pred_check_branch
      %175 = sbr.rel (0) target = $region29
    $region28: #{projection_layer.1} parent=1 // pred_region
      %176 = dma.done [#allocation4], 256
    $region29: #{projection_layer.1} parent=1 // pred_fallthru
      _
    %177 = vsyncpa [#allocation3], 1
    %178 = vsyncpa [#allocation6], 1
    %179 = vsyncpa [#allocation4], 1

</llo_original>
